<compile_context>
chip_gen: v6e
topology: v6e:2x2x1
jax: 0.10.0
libtpu: 0.0.40
codegen_flags: <defaults>
</compile_context>

<pallas_src>
import functools

import jax
import jax.numpy as jnp
from jax import lax
from jax.experimental import pallas as pl
from jax.experimental.pallas import tpu as pltpu

_NEG_INF = float("-inf")


def _maxpool3d_k3s2p1_kernel(main_ref, dhalo_ref, o_ref, *, block_do, NC):
    """One grid step = `block_do` output depths of MaxPool3d(3, stride=2, pad=1).

    main_ref : (4, 2*block_do, Gh, Lp)  H/W parity planes of input depths
               [2*bd*db, 2*bd*(db+1)); plane index = 2*w_parity + h_parity.
    dhalo_ref: (4, 1, Gh, Lp)           depth-halo row d = 2*bd*db - 1 (clamped to 0).
    o_ref    : (block_do, Gh, Lp)       output block; Gh = Ho, Lp = padded Wo*N*C.
    """
    Gh = main_ref.shape[-2]
    Lp = main_ref.shape[-1]
    dt = main_ref.dtype

    # Hoisted constants (JAX does not CSE broadcasts -> build them exactly once).
    first_group = lax.broadcasted_iota(jnp.int32, (1, Lp), 1) < NC   # w = -1 pad lanes
    neg_row = jnp.full((1, Lp), _NEG_INF, dt)                        # h = -1 pad row
    shift = NC % Lp

    def w_reduce(even, odd):
        # even/odd: (..., Gh, Lp) with lane = g*NC + n*C + c at w = 2g / 2g+1.
        # Result lane group g holds max over w in {2g-1, 2g, 2g+1}; the w = 2g-1
        # tap is `odd` rolled by one w-group (NC lanes, XLU slot, np.roll
        # semantics) with group 0 masked to -inf (left padding).
        shp = odd.shape
        odd_m1 = pltpu.roll(odd.reshape(-1, Lp), shift, axis=1)
        odd_m1 = jnp.where(first_group, _NEG_INF, odd_m1).reshape(shp)
        return jnp.maximum(jnp.maximum(even, odd), odd_m1)

    we = w_reduce(main_ref[0], main_ref[2])          # (2*bd, Gh, Lp)  h-even rows
    wo = w_reduce(main_ref[1], main_ref[3])          # (2*bd, Gh, Lp)  h-odd  rows
    wh_e = w_reduce(dhalo_ref[0], dhalo_ref[2])[0]   # (Gh, Lp) depth-halo, h-even
    wh_o = w_reduce(dhalo_ref[1], dhalo_ref[3])[0]   # (Gh, Lp) depth-halo, h-odd

    for j in range(block_do):                        # static unroll (bd kept <= 16)
        # Depth window {2j-1, 2j, 2j+1}; row 2j-1 comes from the halo for j == 0.
        lo_e = wh_e if j == 0 else we[2 * j - 1]
        lo_o = wh_o if j == 0 else wo[2 * j - 1]
        zde = jnp.maximum(jnp.maximum(lo_e, we[2 * j]), we[2 * j + 1])   # h = 2i
        zdo = jnp.maximum(jnp.maximum(lo_o, wo[2 * j]), wo[2 * j + 1])   # h = 2i+1

        # Height window {2i-1, 2i, 2i+1}: one full-slab pair max plus one
        # shifted odd tap (single sublane concat -- no per-row slicing).
        hm = jnp.maximum(zde, zdo)
        if Gh > 1:
            h_m1 = jnp.concatenate([neg_row, zdo[:-1]], axis=0)          # h = 2i-1
            hm = jnp.maximum(hm, h_m1)
        o_ref[j] = hm.astype(o_ref.dtype)


def _maxpool3d_xla(x, k, s, p):
    """Plain-XLA fallback (non-default hyperparameters / shapes that don't fit)."""
    if jnp.issubdtype(x.dtype, jnp.floating):
        init = jnp.array(_NEG_INF, x.dtype)
    else:
        init = jnp.array(jnp.iinfo(x.dtype).min, x.dtype)
    return lax.reduce_window(
        x, init, lax.max,
        window_dimensions=(1, 1, k, k, k),
        window_strides=(1, 1, s, s, s),
        padding=((0, 0), (0, 0)) + ((p, p),) * 3)


def _vmem_limit_bytes():
    """Per-generation scoped-VMEM budget: ~100 MiB on v5e/v6e (128 MiB VMEM),
    ~48 MiB on v7x (64 MiB / TensorCore); conservative 48 MiB if the query fails."""
    cap = 64 * 1024 * 1024
    try:
        info = pltpu.get_tpu_info()
        q = getattr(info, "vmem_capacity_bytes", None)
        if q:
            cap = int(q)
    except Exception:
        pass
    return max(32 << 20, min(int(cap * 0.78), cap - (16 << 20)))


def _footprint_bytes(bd, plane):
    # Double-buffered pipeline buffers (main slab = 4 parity planes x 2*bd depth
    # rows, depth halo = 4 planes, output = bd planes) plus a rough bound on the
    # in-kernel temporaries (W-reduced slabs, per-depth rows).
    pipeline = 2 * (8 * bd + 4 + bd) * plane
    temps = (6 * bd + 6) * plane
    return pipeline + temps


def _pick_block_do(Do, plane, budget):
    """Auto-size the depth block: large DMAs, fits VMEM, >= 2 grid steps (v7x TCs)."""
    cap = min(Do, 16)                        # bound static unroll / vreg live ranges
    if Do >= 2:
        cap = min(cap, -(-Do // 2))          # keep n_db >= 2 so both v7x TCs get work
    bd = 1
    while (bd < cap and _footprint_bytes(bd + 1, plane) <= budget
           and 8 * bd * plane < (8 << 20)):  # stop once the main-slab DMA is big
        bd += 1
    # Prefer an exact divisor of Do (no partial boundary blocks) when one is close.
    for d in range(bd, 0, -1):
        if Do % d == 0:
            if 2 * d >= bd:
                bd = d
            break
    return bd


def down_sample(x, kernel_size=3, stride=2, padding=1):
    """MaxPool3d(kernel_size, stride, padding) on an NCDHW tensor (floor mode)."""
    if (kernel_size, stride, padding) != (3, 2, 1):
        # TODO(synk): the Pallas fast path is specialized to the module defaults
        # (kernel_size=3, stride=2, padding=1); other configs use plain XLA.
        return _maxpool3d_xla(x, kernel_size, stride, padding)
    if not jnp.issubdtype(x.dtype, jnp.floating):
        return _maxpool3d_xla(x, kernel_size, stride, padding)

    N, C, D, H, W = x.shape
    NC = N * C
    Do = (D - 1) // 2 + 1
    Ho = (H - 1) // 2 + 1
    Wo = (W - 1) // 2 + 1
    Dp, Hp, Wp = 2 * Do, 2 * Ho, 2 * Wo      # even extents cover every k=3,s=2 window
    Gh, Gw = Ho, Wo
    L = Gw * NC                              # fused lane axis (w-group major, chan minor)
    Lp = ((L + 127) // 128) * 128            # lane-dense (multiple of 128) stores

    itemsize = jnp.dtype(x.dtype).itemsize
    plane = Gh * Lp * itemsize               # one parity plane of one input depth row

    vmem_limit = _vmem_limit_bytes()
    budget = int(vmem_limit * 0.8)
    if _footprint_bytes(1, plane) > budget:
        # TODO(synk): add a second "parallel" grid axis over H-groups (with a
        # 1-row H-halo BlockSpec mirroring the depth halo) so huge H*W*N*C still
        # fits v7x's 64 MiB VMEM; until then fall back to XLA.
        return _maxpool3d_xla(x, kernel_size, stride, padding)

    bd = _pick_block_do(Do, plane, budget)
    n_db = pl.cdiv(Do, bd)

    # -inf padding to even extents: folds the right/bottom/back pooling padding
    # into the data so the kernel needs no boundary masks.
    pad = ((0, 0), (0, 0), (0, Dp - D), (0, Hp - H), (0, Wp - W))
    if any(p[1] for p in pad):
        x = jnp.pad(x, pad, constant_values=_NEG_INF)

    # Single fused relayout (one XLA transpose; the reshapes are free):
    #   xk[2*pw + ph, d, gh, gw*NC + n*C + c] = x[n, c, d, 2*gh + ph, 2*gw + pw]
    xk = x.reshape(N, C, Dp, Gh, 2, Gw, 2)
    xk = jnp.transpose(xk, (6, 4, 2, 3, 5, 0, 1)).reshape(4, Dp, Gh, L)
    if Lp != L:
        # TODO(synk): folding this lane pad into the transpose (or moving the
        # whole parity-split gather into the kernel via manual make_async_copy
        # from an ANY-space input) would avoid an extra HBM round trip.
        xk = jnp.pad(xk, ((0, 0), (0, 0), (0, 0), (0, Lp - L)),
                     constant_values=_NEG_INF)

    kernel = functools.partial(_maxpool3d_k3s2p1_kernel, block_do=bd, NC=NC)

    out = pl.pallas_call(
        kernel,
        out_shape=jax.ShapeDtypeStruct((Do, Gh, Lp), x.dtype),
        grid=(n_db,),
        in_specs=[
            # Main slab: input depths [2*bd*db, 2*bd*(db+1)).  For a partial last
            # block the out-of-range rows are unspecified on read, but they only
            # feed output depths >= Do whose stores are dropped.
            pl.BlockSpec((4, 2 * bd, Gh, Lp), lambda db: (0, db, 0, 0)),
            # Depth-halo row d = 2*bd*db - 1 (block size 1 => block index is the
            # row index; clamped to 0 for db == 0 where it duplicates row 0 --
            # harmless for max since that row is already in the window).
            pl.BlockSpec((4, 1, Gh, Lp),
                         lambda db: (0, jnp.maximum(2 * bd * db - 1, 0), 0, 0)),
        ],
        out_specs=pl.BlockSpec((bd, Gh, Lp), lambda db: (db, 0, 0)),
        compiler_params=pltpu.CompilerParams(
            dimension_semantics=("parallel",),     # v7x: shard depth blocks over 2 TCs
            vmem_limit_bytes=vmem_limit),
    )(xk, xk)

    # TODO(synk): the relayout + this inverse transpose are extra HBM round trips
    # for a memory-bound op; if xprof shows them comparable to the kernel, move
    # the parity-split gather into the kernel or fuse with the producer.
    out = out[..., :L].reshape(Do, Ho, Wo, N, C)
    return jnp.transpose(out, (3, 4, 0, 1, 2))      # back to NCDHW


class Down_sample:
    """JAX/Pallas mirror of the PyTorch module (MaxPool3d, no parameters)."""

    def __init__(self, kernel_size, stride=2, padding=1):
        self.kernel_size = kernel_size
        self.stride = stride
        self.padding = padding

    def __call__(self, x):
        return down_sample(x, self.kernel_size, self.stride, self.padding)


if __name__ == "__main__":
    key = jax.random.PRNGKey(0)

    def _ref(x):
        return lax.reduce_window(
            x, -jnp.inf, lax.max,
            window_dimensions=(1, 1, 3, 3, 3),
            window_strides=(1, 1, 2, 2, 2),
            padding=((0, 0), (0, 0), (1, 1), (1, 1), (1, 1)))

    block = Down_sample(kernel_size=3, stride=2, padding=1)
    k1, k2 = jax.random.split(key)

    # Main case: NCDHW, even extents, lane axis exactly 128 wide.
    x1 = jax.random.normal(k1, (2, 8, 8, 16, 16), dtype=jnp.float32)
    y1 = block(x1)
    jax.block_until_ready(y1)
    r1 = _ref(x1)
    assert y1.shape == r1.shape == (2, 8, 4, 8, 8), (y1.shape, r1.shape)
    assert jnp.allclose(y1, r1), "Pallas maxpool3d mismatch (even shapes)"

    # Odd depth/height/width and a lane axis that needs padding up to 128.
    x2 = jax.random.normal(k2, (1, 3, 5, 7, 9), dtype=jnp.float32)
    y2 = block(x2)
    jax.block_until_ready(y2)
    r2 = _ref(x2)
    assert y2.shape == r2.shape == (1, 3, 3, 4, 5), (y2.shape, r2.shape)
    assert jnp.allclose(y2, r2), "Pallas maxpool3d mismatch (odd shapes)"

    print("KERNEL_OK")
</pallas_src>

<mosaic_0001>
module attributes {stable_mosaic.version = 11 : i64} {
  func.func @_maxpool3d_k3s2p1_kernel(%arg0: i32, %arg1: memref<4x4x8x128xf32, #tpu.memory_space<vmem>>, %arg2: memref<4x1x8x128xf32, #tpu.memory_space<vmem>>, %arg3: memref<2x8x128xf32, #tpu.memory_space<vmem>>) attributes {dimension_semantics = [#tpu.dimension_semantics<parallel>], iteration_bounds = array<i64: 2>, scalar_prefetch = 0 : i64, scratch_operands = 0 : i64, tpu.core_type = #tpu.core_type<tc>, window_params = [{transform_indices = @transform_0, window_bounds = array<i64: 4, 4, 8, 128>}, {transform_indices = @transform_1, window_bounds = array<i64: 4, 1, 8, 128>}, {transform_indices = @transform_2, window_bounds = array<i64: 2, 8, 128>}]} {
    %0 = tpu.iota {dimensions = array<i32: 1>} : vector<1x128xi32>
    %c16_i32 = arith.constant 16 : i32
    %1 = vector.broadcast %c16_i32 : i32 to vector<1x128xi32>
    %2 = arith.cmpi slt, %0, %1 : vector<1x128xi32>
    %cst = arith.constant 0xFF800000 : f32
    %3 = vector.broadcast %cst : f32 to vector<1x128xf32>
    %c0 = arith.constant 0 : index
    %c0_0 = arith.constant 0 : index
    %c0_1 = arith.constant 0 : index
    %c0_2 = arith.constant 0 : index
    %4 = vector.load %arg1[%c0, %c0_0, %c0_1, %c0_2] : memref<4x4x8x128xf32, #tpu.memory_space<vmem>>, vector<1x4x8x128xf32>
    %5 = vector.shape_cast %4 : vector<1x4x8x128xf32> to vector<4x8x128xf32>
    %c2 = arith.constant 2 : index
    %c0_3 = arith.constant 0 : index
    %c0_4 = arith.constant 0 : index
    %c0_5 = arith.constant 0 : index
    %6 = vector.load %arg1[%c2, %c0_3, %c0_4, %c0_5] : memref<4x4x8x128xf32, #tpu.memory_space<vmem>>, vector<1x4x8x128xf32>
    %7 = vector.shape_cast %6 : vector<1x4x8x128xf32> to vector<4x8x128xf32>
    %8 = vector.shape_cast %7 : vector<4x8x128xf32> to vector<32x128xf32>
    %c16_i32_6 = arith.constant 16 : i32
    %9 = tpu.dynamic_rotate %8 by %c16_i32_6 dim 1 : vector<32x128xf32>, i32 -> vector<32x128xf32>
    %cst_7 = arith.constant 0xFF800000 : f32
    %10 = vector.shape_cast %2 : vector<1x128xi1> to vector<1x128xi1>
    %11 = vector.broadcast %10 : vector<1x128xi1> to vector<32x128xi1>
    %12 = vector.broadcast %cst_7 : f32 to vector<32x128xf32>
    %13 = arith.select %11, %12, %9 : vector<32x128xi1>, vector<32x128xf32>
    %14 = vector.shape_cast %13 : vector<32x128xf32> to vector<4x8x128xf32>
    %15 = arith.maximumf %5, %7 : vector<4x8x128xf32>
    %16 = arith.maximumf %15, %14 : vector<4x8x128xf32>
    %c1 = arith.constant 1 : index
    %c0_8 = arith.constant 0 : index
    %c0_9 = arith.constant 0 : index
    %c0_10 = arith.constant 0 : index
    %17 = vector.load %arg1[%c1, %c0_8, %c0_9, %c0_10] : memref<4x4x8x128xf32, #tpu.memory_space<vmem>>, vector<1x4x8x128xf32>
    %18 = vector.shape_cast %17 : vector<1x4x8x128xf32> to vector<4x8x128xf32>
    %c3 = arith.constant 3 : index
    %c0_11 = arith.constant 0 : index
    %c0_12 = arith.constant 0 : index
    %c0_13 = arith.constant 0 : index
    %19 = vector.load %arg1[%c3, %c0_11, %c0_12, %c0_13] : memref<4x4x8x128xf32, #tpu.memory_space<vmem>>, vector<1x4x8x128xf32>
    %20 = vector.shape_cast %19 : vector<1x4x8x128xf32> to vector<4x8x128xf32>
    %21 = vector.shape_cast %20 : vector<4x8x128xf32> to vector<32x128xf32>
    %c16_i32_14 = arith.constant 16 : i32
    %22 = tpu.dynamic_rotate %21 by %c16_i32_14 dim 1 : vector<32x128xf32>, i32 -> vector<32x128xf32>
    %cst_15 = arith.constant 0xFF800000 : f32
    %23 = vector.shape_cast %2 : vector<1x128xi1> to vector<1x128xi1>
    %24 = vector.broadcast %23 : vector<1x128xi1> to vector<32x128xi1>
    %25 = vector.broadcast %cst_15 : f32 to vector<32x128xf32>
    %26 = arith.select %24, %25, %22 : vector<32x128xi1>, vector<32x128xf32>
    %27 = vector.shape_cast %26 : vector<32x128xf32> to vector<4x8x128xf32>
    %28 = arith.maximumf %18, %20 : vector<4x8x128xf32>
    %29 = arith.maximumf %28, %27 : vector<4x8x128xf32>
    %c0_16 = arith.constant 0 : index
    %c0_17 = arith.constant 0 : index
    %c0_18 = arith.constant 0 : index
    %c0_19 = arith.constant 0 : index
    %30 = vector.load %arg2[%c0_16, %c0_17, %c0_18, %c0_19] : memref<4x1x8x128xf32, #tpu.memory_space<vmem>>, vector<1x1x8x128xf32>
    %31 = vector.shape_cast %30 : vector<1x1x8x128xf32> to vector<1x8x128xf32>
    %c2_20 = arith.constant 2 : index
    %c0_21 = arith.constant 0 : index
    %c0_22 = arith.constant 0 : index
    %c0_23 = arith.constant 0 : index
    %32 = vector.load %arg2[%c2_20, %c0_21, %c0_22, %c0_23] : memref<4x1x8x128xf32, #tpu.memory_space<vmem>>, vector<1x1x8x128xf32>
    %33 = vector.shape_cast %32 : vector<1x1x8x128xf32> to vector<1x8x128xf32>
    %34 = vector.shape_cast %33 : vector<1x8x128xf32> to vector<8x128xf32>
    %c16_i32_24 = arith.constant 16 : i32
    %35 = tpu.dynamic_rotate %34 by %c16_i32_24 dim 1 : vector<8x128xf32>, i32 -> vector<8x128xf32>
    %cst_25 = arith.constant 0xFF800000 : f32
    %36 = vector.shape_cast %2 : vector<1x128xi1> to vector<1x128xi1>
    %37 = vector.broadcast %36 : vector<1x128xi1> to vector<8x128xi1>
    %38 = vector.broadcast %cst_25 : f32 to vector<8x128xf32>
    %39 = arith.select %37, %38, %35 : vector<8x128xi1>, vector<8x128xf32>
    %40 = vector.shape_cast %39 : vector<8x128xf32> to vector<1x8x128xf32>
    %41 = arith.maximumf %31, %33 : vector<1x8x128xf32>
    %42 = arith.maximumf %41, %40 : vector<1x8x128xf32>
    %43 = vector.shape_cast %42 : vector<1x8x128xf32> to vector<8x128xf32>
    %c1_26 = arith.constant 1 : index
    %c0_27 = arith.constant 0 : index
    %c0_28 = arith.constant 0 : index
    %c0_29 = arith.constant 0 : index
    %44 = vector.load %arg2[%c1_26, %c0_27, %c0_28, %c0_29] : memref<4x1x8x128xf32, #tpu.memory_space<vmem>>, vector<1x1x8x128xf32>
    %45 = vector.shape_cast %44 : vector<1x1x8x128xf32> to vector<1x8x128xf32>
    %c3_30 = arith.constant 3 : index
    %c0_31 = arith.constant 0 : index
    %c0_32 = arith.constant 0 : index
    %c0_33 = arith.constant 0 : index
    %46 = vector.load %arg2[%c3_30, %c0_31, %c0_32, %c0_33] : memref<4x1x8x128xf32, #tpu.memory_space<vmem>>, vector<1x1x8x128xf32>
    %47 = vector.shape_cast %46 : vector<1x1x8x128xf32> to vector<1x8x128xf32>
    %48 = vector.shape_cast %47 : vector<1x8x128xf32> to vector<8x128xf32>
    %c16_i32_34 = arith.constant 16 : i32
    %49 = tpu.dynamic_rotate %48 by %c16_i32_34 dim 1 : vector<8x128xf32>, i32 -> vector<8x128xf32>
    %cst_35 = arith.constant 0xFF800000 : f32
    %50 = vector.shape_cast %2 : vector<1x128xi1> to vector<1x128xi1>
    %51 = vector.broadcast %50 : vector<1x128xi1> to vector<8x128xi1>
    %52 = vector.broadcast %cst_35 : f32 to vector<8x128xf32>
    %53 = arith.select %51, %52, %49 : vector<8x128xi1>, vector<8x128xf32>
    %54 = vector.shape_cast %53 : vector<8x128xf32> to vector<1x8x128xf32>
    %55 = arith.maximumf %45, %47 : vector<1x8x128xf32>
    %56 = arith.maximumf %55, %54 : vector<1x8x128xf32>
    %57 = vector.shape_cast %56 : vector<1x8x128xf32> to vector<8x128xf32>
    %58 = vector.extract_strided_slice %16 {offsets = [0, 0, 0], sizes = [1, 8, 128], strides = [1, 1, 1]} : vector<4x8x128xf32> to vector<1x8x128xf32>
    %59 = vector.shape_cast %58 : vector<1x8x128xf32> to vector<8x128xf32>
    %60 = arith.maximumf %43, %59 : vector<8x128xf32>
    %61 = vector.extract_strided_slice %16 {offsets = [1, 0, 0], sizes = [1, 8, 128], strides = [1, 1, 1]} : vector<4x8x128xf32> to vector<1x8x128xf32>
    %62 = vector.shape_cast %61 : vector<1x8x128xf32> to vector<8x128xf32>
    %63 = arith.maximumf %60, %62 : vector<8x128xf32>
    %64 = vector.extract_strided_slice %29 {offsets = [0, 0, 0], sizes = [1, 8, 128], strides = [1, 1, 1]} : vector<4x8x128xf32> to vector<1x8x128xf32>
    %65 = vector.shape_cast %64 : vector<1x8x128xf32> to vector<8x128xf32>
    %66 = arith.maximumf %57, %65 : vector<8x128xf32>
    %67 = vector.extract_strided_slice %29 {offsets = [1, 0, 0], sizes = [1, 8, 128], strides = [1, 1, 1]} : vector<4x8x128xf32> to vector<1x8x128xf32>
    %68 = vector.shape_cast %67 : vector<1x8x128xf32> to vector<8x128xf32>
    %69 = arith.maximumf %66, %68 : vector<8x128xf32>
    %70 = arith.maximumf %63, %69 : vector<8x128xf32>
    %71 = vector.extract_strided_slice %69 {offsets = [0, 0], sizes = [7, 128], strides = [1, 1]} : vector<8x128xf32> to vector<7x128xf32>
    %72 = tpu.concatenate %3, %71 in 0 : vector<1x128xf32>, vector<7x128xf32> -> vector<8x128xf32>
    %73 = arith.maximumf %70, %72 : vector<8x128xf32>
    %c0_36 = arith.constant 0 : index
    %c0_37 = arith.constant 0 : index
    %c0_38 = arith.constant 0 : index
    %74 = vector.load %arg3[%c0_36, %c0_37, %c0_38] : memref<2x8x128xf32, #tpu.memory_space<vmem>>, vector<1x8x128xf32>
    %75 = vector.shape_cast %74 : vector<1x8x128xf32> to vector<8x128xf32>
    %76 = vector.shape_cast %73 : vector<8x128xf32> to vector<1x8x128xf32>
    tpu.vector_store %arg3[%c0_36, %c0_37, %c0_38], %76 {strides = array<i32>} : memref<2x8x128xf32, #tpu.memory_space<vmem>>, vector<1x8x128xf32>,
    %77 = vector.extract_strided_slice %16 {offsets = [1, 0, 0], sizes = [1, 8, 128], strides = [1, 1, 1]} : vector<4x8x128xf32> to vector<1x8x128xf32>
    %78 = vector.shape_cast %77 : vector<1x8x128xf32> to vector<8x128xf32>
    %79 = vector.extract_strided_slice %29 {offsets = [1, 0, 0], sizes = [1, 8, 128], strides = [1, 1, 1]} : vector<4x8x128xf32> to vector<1x8x128xf32>
    %80 = vector.shape_cast %79 : vector<1x8x128xf32> to vector<8x128xf32>
    %81 = vector.extract_strided_slice %16 {offsets = [2, 0, 0], sizes = [1, 8, 128], strides = [1, 1, 1]} : vector<4x8x128xf32> to vector<1x8x128xf32>
    %82 = vector.shape_cast %81 : vector<1x8x128xf32> to vector<8x128xf32>
    %83 = arith.maximumf %78, %82 : vector<8x128xf32>
    %84 = vector.extract_strided_slice %16 {offsets = [3, 0, 0], sizes = [1, 8, 128], strides = [1, 1, 1]} : vector<4x8x128xf32> to vector<1x8x128xf32>
    %85 = vector.shape_cast %84 : vector<1x8x128xf32> to vector<8x128xf32>
    %86 = arith.maximumf %83, %85 : vector<8x128xf32>
    %87 = vector.extract_strided_slice %29 {offsets = [2, 0, 0], sizes = [1, 8, 128], strides = [1, 1, 1]} : vector<4x8x128xf32> to vector<1x8x128xf32>
    %88 = vector.shape_cast %87 : vector<1x8x128xf32> to vector<8x128xf32>
    %89 = arith.maximumf %80, %88 : vector<8x128xf32>
    %90 = vector.extract_strided_slice %29 {offsets = [3, 0, 0], sizes = [1, 8, 128], strides = [1, 1, 1]} : vector<4x8x128xf32> to vector<1x8x128xf32>
    %91 = vector.shape_cast %90 : vector<1x8x128xf32> to vector<8x128xf32>
    %92 = arith.maximumf %89, %91 : vector<8x128xf32>
    %93 = arith.maximumf %86, %92 : vector<8x128xf32>
    %94 = vector.extract_strided_slice %92 {offsets = [0, 0], sizes = [7, 128], strides = [1, 1]} : vector<8x128xf32> to vector<7x128xf32>
    %95 = tpu.concatenate %3, %94 in 0 : vector<1x128xf32>, vector<7x128xf32> -> vector<8x128xf32>
    %96 = arith.maximumf %93, %95 : vector<8x128xf32>
    %c1_39 = arith.constant 1 : index
    %c0_40 = arith.constant 0 : index
    %c0_41 = arith.constant 0 : index
    %97 = vector.load %arg3[%c1_39, %c0_40, %c0_41] : memref<2x8x128xf32, #tpu.memory_space<vmem>>, vector<1x8x128xf32>
    %98 = vector.shape_cast %97 : vector<1x8x128xf32> to vector<8x128xf32>
    %99 = vector.shape_cast %96 : vector<8x128xf32> to vector<1x8x128xf32>
    tpu.vector_store %arg3[%c1_39, %c0_40, %c0_41], %99 {strides = array<i32>} : memref<2x8x128xf32, #tpu.memory_space<vmem>>, vector<1x8x128xf32>,
    return
  }
  func.func @transform_0(%arg0: i32) -> (i32, i32, i32, i32) {
    %c0_i32 = arith.constant 0 : i32
    %c0_i32_0 = arith.constant 0 : i32
    %c0_i32_1 = arith.constant 0 : i32
    %c0_i32_2 = arith.constant 0 : i32
    return %c0_i32, %arg0, %c0_i32_0, %c0_i32_1 : i32, i32, i32, i32
  }
  func.func @transform_1(%arg0: i32) -> (i32, i32, i32, i32) {
    %c4_i32 = arith.constant 4 : i32
    %0 = arith.muli %c4_i32, %arg0 : i32
    %c1_i32 = arith.constant 1 : i32
    %1 = arith.subi %0, %c1_i32 : i32
    %c0_i32 = arith.constant 0 : i32
    %2 = arith.maxsi %1, %c0_i32 : i32
    %c0_i32_0 = arith.constant 0 : i32
    %c0_i32_1 = arith.constant 0 : i32
    %c0_i32_2 = arith.constant 0 : i32
    %c0_i32_3 = arith.constant 0 : i32
    return %c0_i32_0, %2, %c0_i32_1, %c0_i32_2 : i32, i32, i32, i32
  }
  func.func @transform_2(%arg0: i32) -> (i32, i32, i32) {
    %c0_i32 = arith.constant 0 : i32
    %c0_i32_0 = arith.constant 0 : i32
    %c0_i32_1 = arith.constant 0 : i32
    return %arg0, %c0_i32, %c0_i32_0 : i32, i32, i32
  }
}

</mosaic_0001>

<llo_original>
// kernel: tpu_custom_call.1
$region0: #{tpu_custom_call.1}
  #allocation0 [shape = 'u32[]', space=smem, size = 0x4, offset = 0x4, fixed_abs, tag = 'smem constant byte address 0x4 - core index']
  #allocation1 [shape = 'u32[144,128]{1,0:T(1,128)}', space=vmem, size = 0x12000, scoped, tag = 'internal scratch']
  #allocation8 [shape = 's32[]', space=sflag, size = 0x4, offset = 0, fixed_abs, tag = 'sflag constant byte address 0x0 - dummy sync flag']
  %s0 = inlined_call_operand.hbm [shape: f32[4,8,8,128], index: 0, kind: input, shape index: {}]
  %s1 = inlined_call_operand.hbm [shape: f32[4,8,8,128], index: 1, kind: input, shape index: {}]
  %s2 = inlined_call_operand.hbm [shape: f32[4,8,128], index: 2, kind: output, shape index: {}]
  %s3 = sld [smem:[#allocation0]]
  $region49: #{tpu_custom_call.1} parent=0
    _
  %s5 = ssub.s32 1, %s3
  %s6 = scalar_select 0, %s5, %s3
  $region1: #{tpu_custom_call.1} parent=0
    #allocation2 [shape = 'u8[131072]{0}', space=vmem, size = 0x20000, scoped, tag = 'input window, operand 0']
    #allocation3 [shape = 's32[2]{0}', space=sflag, size = 0x8, scoped, tag = 'scoped memory for tpu_custom_call.1']
    #allocation4 [shape = 's32[2]{0}', space=sflag, size = 0x8, scoped, tag = 'scoped memory for tpu_custom_call.1']
    #allocation5 [shape = 'u8[32768]{0}', space=vmem, size = 0x8000, scoped, tag = 'input window, operand 1']
    #allocation6 [shape = 's32[2]{0}', space=sflag, size = 0x8, scoped, tag = 'scoped memory for tpu_custom_call.1']
    #allocation7 [shape = 'u8[16384]{0}', space=vmem, size = 0x4000, scoped, tag = 'output window, operand 0']
    %7 = vsyncpa [#allocation3], 0
    %s8 = scalar_lea.sflag [#allocation3], 1
    %9 = vsyncpa %s8, 0
    %10 = vsyncpa [#allocation6], 0
    %s11 = scalar_lea.sflag [#allocation6], 1
    %12 = vsyncpa %s11, 0
    %13 = vsyncpa [#allocation4], 0
    %s14 = scalar_lea.sflag [#allocation4], 1
    %15 = vsyncpa %s14, 0
    loop: start=0, step=1, limit=4
    $region2: #{tpu_custom_call.1} parent=1 // loop_pre_header
      _
    $region3: #{tpu_custom_call.1} parent=1 // loop_header
      %s17 = sphi 0, %s21
      %p18 = scmp.ge.s32.totalorder %s17, 4
      %s27 = sphi 0, %s29
      %s30 = sphi 0, %s27
      %s31 = sphi 0, %s30
      %s47 = sphi 0, %s31
      %s61 = sphi 0, %s63
      %s64 = sphi 0, %s61
      %s65 = sphi 0, %s64
      %s81 = sphi 0, %s65
      %s87 = sphi 0, %s89
      %s90 = sphi 0, %s87
      %s91 = sphi 0, %s90
      %s107 = sphi 0, %s91
    $region4: #{tpu_custom_call.1} parent=1 // loop_header_branch
      %20 = sbr.rel (%p18) target = $region8
    $region5: #{tpu_custom_call.1} parent=1 // loop_body
      %s22 = ssub.s32 %s17, 1
      %s23 = ssub.s32 %s17, 2
      %s24 = sadd.s32 %s17, 1
      %s25 = ssub.s32 %s17, %s24
      %p26 = scmp.eq.s32.totalorder %s25, 0
      %s28 = sadd.s32 %s27, 1
      %s29 = scalar_select %p26, %s27, %s28
      %p32 = pneg %p26
      %p33 = scmp.eq.s32.totalorder %s17, 1
      %p34 = por %p32, %p33
      %p35 = scmp.ne.s32.totalorder %s27, %s30
      %p36 = scmp.eq.s32.totalorder %s17, 0
      %p37 = por %p35, %p36
      %p38 = scmp.ne.s32.totalorder %s27, %s30
      %p39 = scmp.eq.s32.totalorder %s22, 1
      %p40 = por %p38, %p39
      %p41 = scmp.ne.s32.totalorder %s30, %s31
      %p42 = scmp.eq.s32.totalorder %s22, 0
      %p43 = por %p41, %p42
      %p44 = scmp.ne.s32.totalorder %s30, %s31
      %p45 = scmp.eq.s32.totalorder %s23, 1
      %p46 = por %p44, %p45
      %p48 = scmp.ne.s32.totalorder %s31, %s47
      %p49 = scmp.eq.s32.totalorder %s23, 0
      %p50 = por %p48, %p49
      %s51 = smul.u32 %s17, 4
      %s52 = ssub.s32 %s51, 1
      %p53 = scmp.gt.s32.totalorder %s52, 0
      %s54 = scalar_select %p53, %s52, 0
      %s55 = smul.u32 %s24, 4
      %s56 = ssub.s32 %s55, 1
      %p57 = scmp.gt.s32.totalorder %s56, 0
      %s58 = scalar_select %p57, %s56, 0
      %s59 = ssub.s32 %s54, %s58
      %p60 = scmp.eq.s32.totalorder %s59, 0
      %s62 = sadd.s32 %s61, 1
      %s63 = scalar_select %p60, %s61, %s62
      %p66 = pneg %p60
      %p67 = scmp.eq.s32.totalorder %s17, 1
      %p68 = por %p66, %p67
      %p69 = scmp.ne.s32.totalorder %s61, %s64
      %p70 = scmp.eq.s32.totalorder %s17, 0
      %p71 = por %p69, %p70
      %p72 = scmp.ne.s32.totalorder %s61, %s64
      %p73 = scmp.eq.s32.totalorder %s22, 1
      %p74 = por %p72, %p73
      %p75 = scmp.ne.s32.totalorder %s64, %s65
      %p76 = scmp.eq.s32.totalorder %s22, 0
      %p77 = por %p75, %p76
      %p78 = scmp.ne.s32.totalorder %s64, %s65
      %p79 = scmp.eq.s32.totalorder %s23, 1
      %p80 = por %p78, %p79
      %p82 = scmp.ne.s32.totalorder %s65, %s81
      %p83 = scmp.eq.s32.totalorder %s23, 0
      %p84 = por %p82, %p83
      %s85 = ssub.s32 %s17, %s24
      %p86 = scmp.eq.s32.totalorder %s85, 0
      %s88 = sadd.s32 %s87, 1
      %s89 = scalar_select %p86, %s87, %s88
      %p92 = pneg %p86
      %p93 = scmp.eq.s32.totalorder %s17, 1
      %p94 = por %p92, %p93
      %p95 = scmp.ne.s32.totalorder %s87, %s90
      %p96 = scmp.eq.s32.totalorder %s17, 0
      %p97 = por %p95, %p96
      %p98 = scmp.ne.s32.totalorder %s87, %s90
      %p99 = scmp.eq.s32.totalorder %s22, 1
      %p100 = por %p98, %p99
      %p101 = scmp.ne.s32.totalorder %s90, %s91
      %p102 = scmp.eq.s32.totalorder %s22, 0
      %p103 = por %p101, %p102
      %p104 = scmp.ne.s32.totalorder %s90, %s91
      %p105 = scmp.eq.s32.totalorder %s23, 1
      %p106 = por %p104, %p105
      %p108 = scmp.ne.s32.totalorder %s91, %s107
      %p109 = scmp.eq.s32.totalorder %s23, 0
      %p110 = por %p108, %p109
      %p111 = scmp.le.s32.totalorder 1, %s17
      %p112 = scmp.lt.s32.totalorder %s17, 3
      %p113 = pnand %p111, %p112
      %p114 = pneg %p113
      // Predicated region
      $region9: #{tpu_custom_call.1} parent=5 // pred_check
        _
      $region10: #{tpu_custom_call.1} parent=5 // pred_check_branch
        %116 = sbr.rel (%p113) target = $region12
      $region11: #{tpu_custom_call.1} parent=5 // pred_region
        %s117 = ssub.s32 %s17, 1
      $region12: #{tpu_custom_call.1} parent=5 // pred_fallthru
        _
      %p118 = scmp.lt.s32.totalorder %s17, 2
      // Predicated region
      $region13: #{tpu_custom_call.1} parent=5 // pred_check
        %p119 = pneg %p118
      $region14: #{tpu_custom_call.1} parent=5 // pred_check_branch
        %121 = sbr.rel (%p119) target = $region16
      $region15: #{tpu_custom_call.1} parent=5 // pred_region
        // Predicated region
        $region17: #{tpu_custom_call.1} parent=15 // pred_check
          %p122 = pneg %p37
        $region18: #{tpu_custom_call.1} parent=15 // pred_check_branch
          %124 = sbr.rel (%p122) target = $region20
        $region19: #{tpu_custom_call.1} parent=15 // pred_region
          #allocation9 [shape = 'u32[6]{0}', space=smem, size = 0x18, scoped, tag = 'DMA stride descriptor']
          %s125 = sand.u32 %s27, 1
          %s126 = scalar_lea.sflag [#allocation3], %s125
          %s127 = sand.u32 %s27, 1
          %s128 = smul.addr %s127, 128
          %s129 = scalar_lea.vmem [#allocation2], %s128
          %s130 = smul.u32 4, %s17
          %s132 = ssub.s32 2048, 2048
          %133 = vsyncadd %s126, %s132
          %s134 = smul.addr %s130, 128
          %s135 = scalar_lea.hbm %s0, %s134
          %s137 = sshll.u32 1, 14
          %s138 = sxor.u32 4294967295, %s137
          %s140 = sld [smem:[#allocation0]]
          %s141 = sadd.s32 2, %s140
          %s143 = sshll.u32 7, 26
          %s144 = sxor.u32 4294967295, %s143
          %s145 = sand.u32 0, %s144
          %s146 = sshll.u32 %s141, 26
          %s147 = sor.u32 %s145, %s146
          %s148 = sshll.u32 %s129, 4
          %s149 = int_to_ptr.vmem [resolvable:$true] %s148
          %155 = sst [smem:[#allocation9]] 1024
          %s156 = scalar_lea.smem [#allocation9], 1
          %157 = sst [smem:[%s156]] 512
          %s158 = scalar_lea.smem [#allocation9], 2
          %159 = sst [smem:[%s158]] 4
          %s160 = scalar_lea.smem [#allocation9], 3
          %161 = sst [smem:[%s160]] 128
          %s162 = scalar_lea.smem [#allocation9], 4
          %163 = sst [smem:[%s162]] 128
          %s164 = scalar_lea.smem [#allocation9], 5
          %165 = sst [smem:[%s164]] 8
          %167 = dma.general %s135, 2048, %s149, %s126, 131072, [#allocation9], %s147, 0
        $region20: #{tpu_custom_call.1} parent=15 // pred_fallthru
          _
        // Predicated region
        $region21: #{tpu_custom_call.1} parent=15 // pred_check
          %p168 = pneg %p71
        $region22: #{tpu_custom_call.1} parent=15 // pred_check_branch
          %170 = sbr.rel (%p168) target = $region24
        $region23: #{tpu_custom_call.1} parent=15 // pred_region
          %s171 = sand.u32 %s61, 1
          %s172 = scalar_lea.sflag [#allocation6], %s171
          %s173 = sand.u32 %s61, 1
          %s174 = smul.addr %s173, 32
          %s175 = scalar_lea.vmem [#allocation5], %s174
          %s176 = smul.u32 %s17, 4
          %s177 = ssub.s32 %s176, 1
          %p178 = scmp.gt.s32.totalorder %s177, 0
          %s179 = scalar_select %p178, %s177, 0
          %s181 = ssub.s32 512, 512
          %182 = vsyncadd %s172, %s181
          %s183 = smul.addr %s179, 128
          %s184 = scalar_lea.hbm %s1, %s183
          %s185 = sshll.u32 %s175, 4
          %s186 = int_to_ptr.vmem [resolvable:$true] %s185
          %191 = dma.hbm_to_vmem [thread:$0]  %s184, 512, %s186, %s172, 1024, 128, 8
        $region24: #{tpu_custom_call.1} parent=15 // pred_fallthru
          _
      $region16: #{tpu_custom_call.1} parent=5 // pred_fallthru
        _
      %p192 = scmp.le.s32.totalorder 1, %s17
      %p193 = scmp.lt.s32.totalorder %s17, 3
      %p194 = pnand %p192, %p193
      %p195 = pneg %p194
      // Predicated region
      $region25: #{tpu_custom_call.1} parent=5 // pred_check
        _
      $region26: #{tpu_custom_call.1} parent=5 // pred_check_branch
        %197 = sbr.rel (%p194) target = $region28
      $region27: #{tpu_custom_call.1} parent=5 // pred_region
        %s198 = ssub.s32 %s17, 1
        %s199 = sand.u32 %s30, 1
        %s200 = scalar_lea.sflag [#allocation3], %s199
        %s201 = sand.u32 %s30, 1
        %s202 = smul.addr %s201, 128
        %s203 = scalar_lea.vmem [#allocation2], %s202
        // Predicated region
        $region29: #{tpu_custom_call.1} parent=27 // pred_check
          %p204 = pneg %p43
        $region30: #{tpu_custom_call.1} parent=27 // pred_check_branch
          %206 = sbr.rel (%p204) target = $region32
        $region31: #{tpu_custom_call.1} parent=27 // pred_region
          %207 = dma.done %s200, 2048
        $region32: #{tpu_custom_call.1} parent=27 // pred_fallthru
          _
        %s208 = sand.u32 %s64, 1
        %s209 = scalar_lea.sflag [#allocation6], %s208
        %s210 = sand.u32 %s64, 1
        %s211 = smul.addr %s210, 32
        %s212 = scalar_lea.vmem [#allocation5], %s211
        // Predicated region
        $region33: #{tpu_custom_call.1} parent=27 // pred_check
          %p213 = pneg %p77
        $region34: #{tpu_custom_call.1} parent=27 // pred_check_branch
          %215 = sbr.rel (%p213) target = $region36
        $region35: #{tpu_custom_call.1} parent=27 // pred_region
          %216 = dma.done %s209, 512
        $region36: #{tpu_custom_call.1} parent=27 // pred_fallthru
          _
        %s217 = sand.u32 %s30, 1
        %s218 = scalar_lea.sflag [#allocation3], %s217
        %s219 = sand.u32 %s30, 1
        %s220 = smul.addr %s219, 128
        %s221 = scalar_lea.vmem [#allocation2], %s220
        %p222 = pneg %p43
        %p223 = pneg %p40
        %s224 = sand.u32 %s64, 1
        %s225 = scalar_lea.sflag [#allocation6], %s224
        %s226 = sand.u32 %s64, 1
        %s227 = smul.addr %s226, 32
        %s228 = scalar_lea.vmem [#allocation5], %s227
        %p229 = pneg %p77
        %p230 = pneg %p74
        %p231 = pneg %p103
        %p232 = pneg %p100
        %s233 = sand.u32 %s90, 1
        %s234 = scalar_lea.sflag [#allocation4], %s233
        %s235 = sand.u32 %s90, 1
        %s236 = smul.addr %s235, 16
        %s237 = scalar_lea.vmem [#allocation7], %s236
        %s238 = smul.u32 4, %s22
        %s239 = smul.u32 %s22, 4
        %s240 = ssub.s32 %s239, 1
        %p241 = scmp.gt.s32.totalorder %s240, 0
        %s242 = scalar_select %p241, %s240, 0
        %s243 = smul.u32 2, %s22
        %v244 = vlaneseq
        %v245 = vand.u32 %v244, 127
        %vm246 = vcmp.lt.s32.totalorder %v245, 16
        %v247 = vld [vmem:[%s203] sm:$0xff]
        %v248 = vld [vmem:[%s203 + $0x8] sm:$0xff]
        %v249 = vld [vmem:[%s203 + $0x10] sm:$0xff]
        %v250 = vld [vmem:[%s203 + $0x18] sm:$0xff]
        %s251 = scalar_lea.vmem %s203, 64 [#allocation2]
        %v252 = vld [vmem:[%s251] sm:$0xff]
        %v253 = vld [vmem:[%s251 + $0x8] sm:$0xff]
        %v254 = vld [vmem:[%s251 + $0x10] sm:$0xff]
        %v255 = vld [vmem:[%s251 + $0x18] sm:$0xff]
        %256 = vrot.lane.b32.xlu0 %v252, 16
        %v257 = vpop.permute.xlu0 %256
        %258 = vrot.lane.b32.xlu0 %v253, 16
        %v259 = vpop.permute.xlu0 %258
        %260 = vrot.lane.b32.xlu0 %v254, 16
        %v261 = vpop.permute.xlu0 %260
        %262 = vrot.lane.b32.xlu0 %v255, 16
        %v263 = vpop.permute.xlu0 %262
        %v264 = vsel %vm246, 1, 0
        %vm265 = vcmp.eq.s32.totalorder %v264, 1
        %v266 = vsel %vm265, -inf, %v257
        %v267 = vsel %vm265, -inf, %v259
        %v268 = vsel %vm265, -inf, %v261
        %v269 = vsel %vm265, -inf, %v263
        %v270 = vmax.f32 %v247, %v252
        %v271 = vmax.f32 %v248, %v253
        %v272 = vmax.f32 %v249, %v254
        %v273 = vmax.f32 %v250, %v255
        %v274 = vmax.f32 %v270, %v266
        %v275 = vmax.f32 %v271, %v267
        %v276 = vmax.f32 %v272, %v268
        %v277 = vmax.f32 %v273, %v269
        %s278 = scalar_lea.vmem %s203, 32 [#allocation2]
        %v279 = vld [vmem:[%s278] sm:$0xff]
        %v280 = vld [vmem:[%s278 + $0x8] sm:$0xff]
        %v281 = vld [vmem:[%s278 + $0x10] sm:$0xff]
        %v282 = vld [vmem:[%s278 + $0x18] sm:$0xff]
        %s283 = scalar_lea.vmem %s203, 96 [#allocation2]
        %v284 = vld [vmem:[%s283] sm:$0xff]
        %v285 = vld [vmem:[%s283 + $0x8] sm:$0xff]
        %v286 = vld [vmem:[%s283 + $0x10] sm:$0xff]
        %v287 = vld [vmem:[%s283 + $0x18] sm:$0xff]
        %288 = vrot.lane.b32.xlu0 %v284, 16
        %v289 = vpop.permute.xlu0 %288
        %290 = vrot.lane.b32.xlu0 %v285, 16
        %v291 = vpop.permute.xlu0 %290
        %292 = vrot.lane.b32.xlu0 %v286, 16
        %v293 = vpop.permute.xlu0 %292
        %294 = vrot.lane.b32.xlu0 %v287, 16
        %v295 = vpop.permute.xlu0 %294
        %v296 = vsel %vm265, -inf, %v289
        %v297 = vsel %vm265, -inf, %v291
        %v298 = vsel %vm265, -inf, %v293
        %v299 = vsel %vm265, -inf, %v295
        %v300 = vmax.f32 %v279, %v284
        %v301 = vmax.f32 %v280, %v285
        %v302 = vmax.f32 %v281, %v286
        %v303 = vmax.f32 %v282, %v287
        %v304 = vmax.f32 %v300, %v296
        %v305 = vmax.f32 %v301, %v297
        %v306 = vmax.f32 %v302, %v298
        %v307 = vmax.f32 %v303, %v299
        %v308 = vld [vmem:[%s212] sm:$0xff]
        %s309 = scalar_lea.vmem %s212, 16 [#allocation5]
        %v310 = vld [vmem:[%s309] sm:$0xff]
        %311 = vrot.lane.b32.xlu0 %v310, 16
        %v312 = vpop.permute.xlu0 %311
        %v313 = vsel %vm265, -inf, %v312
        %v314 = vmax.f32 %v308, %v310
        %v315 = vmax.f32 %v314, %v313
        %s316 = scalar_lea.vmem %s212, 8 [#allocation5]
        %v317 = vld [vmem:[%s316] sm:$0xff]
        %s318 = scalar_lea.vmem %s212, 24 [#allocation5]
        %v319 = vld [vmem:[%s318] sm:$0xff]
        %320 = vrot.lane.b32.xlu0 %v319, 16
        %v321 = vpop.permute.xlu0 %320
        %v322 = vsel %vm265, -inf, %v321
        %v323 = vmax.f32 %v317, %v319
        %v324 = vmax.f32 %v323, %v322
        %v325 = vmax.f32 %v315, %v274
        %v326 = vmax.f32 %v325, %v275
        %v327 = vmax.f32 %v324, %v304
        %v328 = vmax.f32 %v327, %v305
        %v329 = vmax.f32 %v326, %v328
        %v331 = vrot.slane %v328, 7
        %vm333 = vcmask 1040384
        %v334 = vsel %vm333, -inf, %v331
        %v335 = vmax.f32 %v329, %v334
        %336 = vst [vmem:[%s237] sm:$0xff] %v335
        %v337 = vmax.f32 %v275, %v276
        %v338 = vmax.f32 %v337, %v277
        %v339 = vmax.f32 %v305, %v306
        %v340 = vmax.f32 %v339, %v307
        %v341 = vmax.f32 %v338, %v340
        %v343 = vrot.slane %v340, 7
        %v345 = vsel %vm333, -inf, %v343
        %v346 = vmax.f32 %v341, %v345
        %s347 = scalar_lea.vmem %s237, 8 [#allocation7]
        %348 = vst [vmem:[%s347] sm:$0xff] %v346
        %s349 = sand.u32 %s90, 1
        %s350 = scalar_lea.sflag [#allocation4], %s349
        %s351 = sand.u32 %s90, 1
        %s352 = smul.addr %s351, 16
        %s353 = scalar_lea.vmem [#allocation7], %s352
        // Predicated region
        $region37: #{tpu_custom_call.1} parent=27 // pred_check
          %p354 = pneg %p100
        $region38: #{tpu_custom_call.1} parent=27 // pred_check_branch
          %356 = sbr.rel (%p354) target = $region40
        $region39: #{tpu_custom_call.1} parent=27 // pred_region
          %s357 = smul.u32 2, %s22
          %s359 = ssub.s32 256, 256
          %360 = vsyncadd %s350, %s359
          %s361 = smul.addr %s357, 128
          %s362 = scalar_lea.hbm %s2, %s361
          %s363 = sshll.u32 %s353, 4
          %s364 = int_to_ptr.vmem [resolvable:$true] %s363
          %369 = dma.vmem_to_hbm [thread:$0]  %s364, 256, %s362, %s350, 128, 128, 8
        $region40: #{tpu_custom_call.1} parent=27 // pred_fallthru
          _
      $region28: #{tpu_custom_call.1} parent=5 // pred_fallthru
        _
      %p370 = scmp.le.s32.totalorder 2, %s17
      // Predicated region
      $region41: #{tpu_custom_call.1} parent=5 // pred_check
        %p371 = pneg %p370
      $region42: #{tpu_custom_call.1} parent=5 // pred_check_branch
        %373 = sbr.rel (%p371) target = $region44
      $region43: #{tpu_custom_call.1} parent=5 // pred_region
        %s374 = ssub.s32 %s17, 2
        // Predicated region
        $region45: #{tpu_custom_call.1} parent=43 // pred_check
          %p375 = pneg %p106
        $region46: #{tpu_custom_call.1} parent=43 // pred_check_branch
          %377 = sbr.rel (%p375) target = $region48
        $region47: #{tpu_custom_call.1} parent=43 // pred_region
          %s378 = sand.u32 %s91, 1
          %s379 = scalar_lea.sflag [#allocation4], %s378
          %s380 = sand.u32 %s91, 1
          %s381 = smul.addr %s380, 16
          %s382 = scalar_lea.vmem [#allocation7], %s381
          %383 = dma.done %s379, 256
        $region48: #{tpu_custom_call.1} parent=43 // pred_fallthru
          _
      $region44: #{tpu_custom_call.1} parent=5 // pred_fallthru
        _
    $region6: #{tpu_custom_call.1} parent=1 // loop_footer
      %s21 = sadd.s32 1, %s17
    $region7: #{tpu_custom_call.1} parent=1 // loop_footer_branch
      %16 = sbr.rel target = $region3
    $region8: #{tpu_custom_call.1} parent=1 // loop_exit
      _
    %384 = vsyncpa [#allocation3], 1
    %s385 = scalar_lea.sflag [#allocation3], 1
    %386 = vsyncpa %s385, 1
    %387 = vsyncpa [#allocation6], 1
    %s388 = scalar_lea.sflag [#allocation6], 1
    %389 = vsyncpa %s388, 1
    %390 = vsyncpa [#allocation4], 1
    %s391 = scalar_lea.sflag [#allocation4], 1
    %392 = vsyncpa %s391, 1

</llo_original>
